<compile_context>
chip_gen: v5e
topology: v5e:2x2
jax: 0.10.0
libtpu: 0.0.40
codegen_flags: <defaults>
</compile_context>

<pallas_src>
import jax
import jax.numpy as jnp
from jax.experimental import pallas as pl
from jax.experimental.pallas import tpu as pltpu

STATE_DIM = 3     # Pendulum observation space
ACTION_DIM = 1    # Pendulum action space
H1, H2, H3 = 256, 128, 64
H3_PAD = 128      # layer-3 output padded to a full 128-sublane tile
HEAD_ROWS = 8     # fused mu/std head rows, padded to one sublane group


def _round_up(n, m):
    return ((n + m - 1) // m) * m


def _choose_tiling(batch):
    """Returns (tile_rows, padded_batch)."""
    if batch <= 128:
        tile = _round_up(max(batch, 1), 8)        # single tile, minimal waste
        return tile, tile
    # >= 2 grid steps (v7x megacore), lane-aligned tiles of 128..512 rows.
    tile = min(512, _round_up((batch + 1) // 2, 128))
    return tile, _round_up(batch, tile)


def _softplus(x):
    # PyTorch F.softplus (beta=1, threshold=20): x if x > 20 else log1p(exp(x))
    safe = jnp.minimum(x, 20.0)
    return jnp.where(x > 20.0, x, jnp.log1p(jnp.exp(safe)))


def actor_kernel(x_ref,
                 w1_ref, b1_ref,
                 w2_ref, b2_ref,
                 w3_ref, b3_ref,
                 wh_ref, bh_ref,
                 out_ref):
    # Transposed layout everywhere: features on sublanes, batch on lanes.
    x_t = x_ref[...]        # (3, TILE_B)
    w1_t = w1_ref[...]      # (256, 3)

    # Layer 1 on the VPU: K = 3 would waste an MXU pass -> 3 broadcast FMAs.
    h1 = (w1_t[:, 0:1] * x_t[0:1, :]
          + w1_t[:, 1:2] * x_t[1:2, :]
          + w1_t[:, 2:3] * x_t[2:3, :]
          + b1_ref[...])
    h1 = jnp.maximum(h1, 0.0)                                   # (256, TILE_B)

    h2 = jnp.dot(w2_ref[...], h1, preferred_element_type=jnp.float32) + b2_ref[...]
    h2 = jnp.maximum(h2, 0.0)                                   # (128, TILE_B)

    h3 = jnp.dot(w3_ref[...], h2, preferred_element_type=jnp.float32) + b3_ref[...]
    h3 = jnp.maximum(h3, 0.0)          # (128, TILE_B); rows 64: are exactly 0

    # Fused heads: row 0 = mu pre-activation, row 1 = std pre-activation.
    heads = jnp.dot(wh_ref[...], h3, preferred_element_type=jnp.float32) + bh_ref[...]
    # (HEAD_ROWS, TILE_B)

    # Lane-dense epilogue: transcendentals only touch single-sublane rows.
    mu = 2.0 * jnp.tanh(heads[0:ACTION_DIM, :])
    std = jnp.maximum(_softplus(heads[ACTION_DIM:2 * ACTION_DIM, :]), 0.001)
    out_ref[0:ACTION_DIM, :] = mu
    out_ref[ACTION_DIM:2 * ACTION_DIM, :] = std


def actor_forward(x, params):
    """x: [B, STATE_DIM] f32. params: dict of weights/biases. Returns (mu, std)."""
    B = x.shape[0]
    tile, b_pad = _choose_tiling(B)
    grid = b_pad // tile

    if b_pad != B:
        x = jnp.pad(x, ((0, b_pad - B), (0, 0)))
    x_t = x.T                                                    # (3, b_pad)

    # Transposed (and zero-padded) weights/biases.
    w1_t = params["w1"].T                                        # (256, 3)
    b1_t = params["b1"].T                                        # (256, 1)
    w2_t = params["w2"].T                                        # (128, 256)
    b2_t = params["b2"].T                                        # (128, 1)
    w3_t = jnp.pad(params["w3"].T, ((0, H3_PAD - H3), (0, 0)))   # (128, 128)
    b3_t = jnp.pad(params["b3"].T, ((0, H3_PAD - H3), (0, 0)))   # (128, 1)
    wh = jnp.concatenate([params["w_mu"], params["w_std"]], axis=1).T      # (2, 64)
    wh_t = jnp.pad(wh, ((0, HEAD_ROWS - 2 * ACTION_DIM), (0, H3_PAD - H3)))  # (8, 128)
    bh = jnp.concatenate([params["b_mu"], params["b_std"]], axis=1).T      # (2, 1)
    bh_t = jnp.pad(bh, ((0, HEAD_ROWS - 2 * ACTION_DIM), (0, 0)))            # (8, 1)

    const = lambda i: (0, 0)   # weights/biases stay VMEM-resident across steps
    in_specs = [
        pl.BlockSpec((STATE_DIM, tile), lambda i: (0, i)),       # x (batch-tiled)
        pl.BlockSpec((H1, STATE_DIM), const),
        pl.BlockSpec((H1, 1), const),
        pl.BlockSpec((H2, H1), const),
        pl.BlockSpec((H2, 1), const),
        pl.BlockSpec((H3_PAD, H2), const),
        pl.BlockSpec((H3_PAD, 1), const),
        pl.BlockSpec((HEAD_ROWS, H3_PAD), const),
        pl.BlockSpec((HEAD_ROWS, 1), const),
    ]
    out_spec = pl.BlockSpec((2 * ACTION_DIM, tile), lambda i: (0, i))

    flops = 2 * b_pad * (STATE_DIM * H1 + H1 * H2 + H2 * H3_PAD + H3_PAD * HEAD_ROWS)
    transcendentals = 3 * b_pad * ACTION_DIM               # tanh, exp, log1p
    weight_bytes = 4 * (H1 * STATE_DIM + H1 + H2 * H1 + H2 + H3_PAD * H2 + H3_PAD
                        + HEAD_ROWS * H3_PAD + HEAD_ROWS)
    bytes_accessed = (4 * STATE_DIM * b_pad + weight_bytes
                      + 4 * 2 * ACTION_DIM * b_pad)

    out = pl.pallas_call(
        actor_kernel,
        out_shape=jax.ShapeDtypeStruct((2 * ACTION_DIM, b_pad), jnp.float32),
        grid=(grid,),
        in_specs=in_specs,
        out_specs=out_spec,
        compiler_params=pltpu.CompilerParams(
            dimension_semantics=("parallel",)),
        cost_estimate=pl.CostEstimate(
            flops=flops,
            transcendentals=transcendentals,
            bytes_accessed=bytes_accessed),
    )(x_t, w1_t, b1_t, w2_t, b2_t, w3_t, b3_t, wh_t, bh_t)

    mu = out[0:ACTION_DIM, :B].T                 # (B, ACTION_DIM)
    std = out[ACTION_DIM:2 * ACTION_DIM, :B].T   # (B, ACTION_DIM)
    return mu, std


def init_params(key):
    """Deterministic init mimicking PyTorch nn.Linear default (U[-1/sqrt(fan_in), +])."""
    dims = [(STATE_DIM, H1), (H1, H2), (H2, H3), (H3, ACTION_DIM), (H3, ACTION_DIM)]
    names = ["1", "2", "3", "_mu", "_std"]
    params = {}
    keys = jax.random.split(key, 2 * len(dims))
    for i, ((fan_in, fan_out), name) in enumerate(zip(dims, names)):
        bound = 1.0 / jnp.sqrt(float(fan_in))
        params[f"w{name}"] = jax.random.uniform(
            keys[2 * i], (fan_in, fan_out), jnp.float32, -bound, bound)
        params[f"b{name}"] = jax.random.uniform(
            keys[2 * i + 1], (1, fan_out), jnp.float32, -bound, bound)
    return params


def reference_forward(x, p):
    h1 = jnp.maximum(x @ p["w1"] + p["b1"], 0.0)
    h2 = jnp.maximum(h1 @ p["w2"] + p["b2"], 0.0)
    h3 = jnp.maximum(h2 @ p["w3"] + p["b3"], 0.0)
    mu = 2.0 * jnp.tanh(h3 @ p["w_mu"] + p["b_mu"])
    std = jnp.maximum(jax.nn.softplus(h3 @ p["w_std"] + p["b_std"]), 0.001)
    return mu, std


if __name__ == "__main__":
    key = jax.random.PRNGKey(0)
    pkey, xkey = jax.random.split(key)
    params = init_params(pkey)

    batch = 8
    x = jax.random.normal(xkey, (batch, STATE_DIM), jnp.float32)

    mu, std = actor_forward(x, params)
    jax.block_until_ready((mu, std))

    mu_ref, std_ref = reference_forward(x, params)
    assert mu.shape == (batch, ACTION_DIM) and std.shape == (batch, ACTION_DIM)
    assert jnp.allclose(mu, mu_ref, atol=1e-5, rtol=1e-5)
    assert jnp.allclose(std, std_ref, atol=1e-5, rtol=1e-5)
    assert bool(jnp.all(std >= 0.001))

    print("KERNEL_OK")
</pallas_src>

<mosaic_0001>
module attributes {stable_mosaic.version = 11 : i64} {
  func.func @actor_kernel(%arg0: i32, %arg1: memref<3x8xf32, #tpu.memory_space<vmem>>, %arg2: memref<256x3xf32, #tpu.memory_space<vmem>>, %arg3: memref<256x1xf32, #tpu.memory_space<vmem>>, %arg4: memref<128x256xf32, #tpu.memory_space<vmem>>, %arg5: memref<128x1xf32, #tpu.memory_space<vmem>>, %arg6: memref<128x128xf32, #tpu.memory_space<vmem>>, %arg7: memref<128x1xf32, #tpu.memory_space<vmem>>, %arg8: memref<8x128xf32, #tpu.memory_space<vmem>>, %arg9: memref<8x1xf32, #tpu.memory_space<vmem>>, %arg10: memref<2x8xf32, #tpu.memory_space<vmem>>) attributes {dimension_semantics = [#tpu.dimension_semantics<parallel>], iteration_bounds = array<i64: 1>, scalar_prefetch = 0 : i64, scratch_operands = 0 : i64, tpu.core_type = #tpu.core_type<tc>, window_params = [{transform_indices = @transform_0, window_bounds = array<i64: 3, 8>}, {pipeline_mode = #tpu.pipeline_mode<synchronous>, transform_indices = @transform_1, window_bounds = array<i64: 256, 3>}, {pipeline_mode = #tpu.pipeline_mode<synchronous>, transform_indices = @transform_2, window_bounds = array<i64: 256, 1>}, {pipeline_mode = #tpu.pipeline_mode<synchronous>, transform_indices = @transform_3, window_bounds = array<i64: 128, 256>}, {pipeline_mode = #tpu.pipeline_mode<synchronous>, transform_indices = @transform_4, window_bounds = array<i64: 128, 1>}, {pipeline_mode = #tpu.pipeline_mode<synchronous>, transform_indices = @transform_5, window_bounds = array<i64: 128, 128>}, {pipeline_mode = #tpu.pipeline_mode<synchronous>, transform_indices = @transform_6, window_bounds = array<i64: 128, 1>}, {pipeline_mode = #tpu.pipeline_mode<synchronous>, transform_indices = @transform_7, window_bounds = array<i64: 8, 128>}, {pipeline_mode = #tpu.pipeline_mode<synchronous>, transform_indices = @transform_8, window_bounds = array<i64: 8, 1>}, {transform_indices = @transform_9, window_bounds = array<i64: 2, 8>}]} {
    %c0 = arith.constant 0 : index
    %c0_0 = arith.constant 0 : index
    %0 = vector.load %arg1[%c0, %c0_0] : memref<3x8xf32, #tpu.memory_space<vmem>>, vector<3x8xf32>
    %c0_1 = arith.constant 0 : index
    %c0_2 = arith.constant 0 : index
    %1 = vector.load %arg2[%c0_1, %c0_2] : memref<256x3xf32, #tpu.memory_space<vmem>>, vector<256x3xf32>
    %2 = vector.extract_strided_slice %1 {offsets = [0, 0], sizes = [256, 1], strides = [1, 1]} : vector<256x3xf32> to vector<256x1xf32>
    %3 = vector.extract_strided_slice %0 {offsets = [0, 0], sizes = [1, 8], strides = [1, 1]} : vector<3x8xf32> to vector<1x8xf32>
    %4 = vector.broadcast %2 : vector<256x1xf32> to vector<256x8xf32>
    %5 = vector.broadcast %3 : vector<1x8xf32> to vector<256x8xf32>
    %6 = arith.mulf %4, %5 : vector<256x8xf32>
    %7 = vector.extract_strided_slice %1 {offsets = [0, 1], sizes = [256, 1], strides = [1, 1]} : vector<256x3xf32> to vector<256x1xf32>
    %8 = vector.extract_strided_slice %0 {offsets = [1, 0], sizes = [1, 8], strides = [1, 1]} : vector<3x8xf32> to vector<1x8xf32>
    %9 = vector.broadcast %7 : vector<256x1xf32> to vector<256x8xf32>
    %10 = vector.broadcast %8 : vector<1x8xf32> to vector<256x8xf32>
    %11 = arith.mulf %9, %10 : vector<256x8xf32>
    %12 = arith.addf %6, %11 : vector<256x8xf32>
    %13 = vector.extract_strided_slice %1 {offsets = [0, 2], sizes = [256, 1], strides = [1, 1]} : vector<256x3xf32> to vector<256x1xf32>
    %14 = vector.extract_strided_slice %0 {offsets = [2, 0], sizes = [1, 8], strides = [1, 1]} : vector<3x8xf32> to vector<1x8xf32>
    %15 = vector.broadcast %13 : vector<256x1xf32> to vector<256x8xf32>
    %16 = vector.broadcast %14 : vector<1x8xf32> to vector<256x8xf32>
    %17 = arith.mulf %15, %16 : vector<256x8xf32>
    %18 = arith.addf %12, %17 : vector<256x8xf32>
    %c0_3 = arith.constant 0 : index
    %c0_4 = arith.constant 0 : index
    %19 = vector.load %arg3[%c0_3, %c0_4] : memref<256x1xf32, #tpu.memory_space<vmem>>, vector<256x1xf32>
    %20 = vector.broadcast %19 : vector<256x1xf32> to vector<256x8xf32>
    %21 = arith.addf %18, %20 : vector<256x8xf32>
    %cst = arith.constant 0.000000e+00 : f32
    %22 = vector.broadcast %cst : f32 to vector<256x8xf32>
    %23 = arith.maximumf %21, %22 : vector<256x8xf32>
    %c0_5 = arith.constant 0 : index
    %c0_6 = arith.constant 0 : index
    %24 = vector.load %arg4[%c0_5, %c0_6] : memref<128x256xf32, #tpu.memory_space<vmem>>, vector<128x256xf32>
    %cst_7 = arith.constant dense<0.000000e+00> : vector<128x8xf32>
    %25 = tpu.matmul %24, %23, %cst_7 {dimension_numbers = #tpu.dot_dimension_numbers<[1], [0], [0], [1], [0, 0, 1, 1], [], []>} : vector<128x256xf32>, vector<256x8xf32>, vector<128x8xf32> -> vector<128x8xf32>
    %c0_8 = arith.constant 0 : index
    %c0_9 = arith.constant 0 : index
    %26 = vector.load %arg5[%c0_8, %c0_9] : memref<128x1xf32, #tpu.memory_space<vmem>>, vector<128x1xf32>
    %27 = vector.broadcast %26 : vector<128x1xf32> to vector<128x8xf32>
    %28 = arith.addf %25, %27 : vector<128x8xf32>
    %cst_10 = arith.constant 0.000000e+00 : f32
    %29 = vector.broadcast %cst_10 : f32 to vector<128x8xf32>
    %30 = arith.maximumf %28, %29 : vector<128x8xf32>
    %c0_11 = arith.constant 0 : index
    %c0_12 = arith.constant 0 : index
    %31 = vector.load %arg6[%c0_11, %c0_12] : memref<128x128xf32, #tpu.memory_space<vmem>>, vector<128x128xf32>
    %cst_13 = arith.constant dense<0.000000e+00> : vector<128x8xf32>
    %32 = tpu.matmul %31, %30, %cst_13 {dimension_numbers = #tpu.dot_dimension_numbers<[1], [0], [0], [1], [0, 0, 1, 1], [], []>} : vector<128x128xf32>, vector<128x8xf32>, vector<128x8xf32> -> vector<128x8xf32>
    %c0_14 = arith.constant 0 : index
    %c0_15 = arith.constant 0 : index
    %33 = vector.load %arg7[%c0_14, %c0_15] : memref<128x1xf32, #tpu.memory_space<vmem>>, vector<128x1xf32>
    %34 = vector.broadcast %33 : vector<128x1xf32> to vector<128x8xf32>
    %35 = arith.addf %32, %34 : vector<128x8xf32>
    %cst_16 = arith.constant 0.000000e+00 : f32
    %36 = vector.broadcast %cst_16 : f32 to vector<128x8xf32>
    %37 = arith.maximumf %35, %36 : vector<128x8xf32>
    %c0_17 = arith.constant 0 : index
    %c0_18 = arith.constant 0 : index
    %38 = vector.load %arg8[%c0_17, %c0_18] : memref<8x128xf32, #tpu.memory_space<vmem>>, vector<8x128xf32>
    %cst_19 = arith.constant dense<0.000000e+00> : vector<8x8xf32>
    %39 = tpu.matmul %38, %37, %cst_19 {dimension_numbers = #tpu.dot_dimension_numbers<[1], [0], [0], [1], [0, 0, 1, 1], [], []>} : vector<8x128xf32>, vector<128x8xf32>, vector<8x8xf32> -> vector<8x8xf32>
    %c0_20 = arith.constant 0 : index
    %c0_21 = arith.constant 0 : index
    %40 = vector.load %arg9[%c0_20, %c0_21] : memref<8x1xf32, #tpu.memory_space<vmem>>, vector<8x1xf32>
    %41 = vector.broadcast %40 : vector<8x1xf32> to vector<8x8xf32>
    %42 = arith.addf %39, %41 : vector<8x8xf32>
    %43 = vector.extract_strided_slice %42 {offsets = [0, 0], sizes = [1, 8], strides = [1, 1]} : vector<8x8xf32> to vector<1x8xf32>
    %44 = math.tanh %43 : vector<1x8xf32>
    %cst_22 = arith.constant 2.000000e+00 : f32
    %45 = vector.broadcast %cst_22 : f32 to vector<1x8xf32>
    %46 = arith.mulf %45, %44 : vector<1x8xf32>
    %47 = vector.extract_strided_slice %42 {offsets = [1, 0], sizes = [1, 8], strides = [1, 1]} : vector<8x8xf32> to vector<1x8xf32>
    %cst_23 = arith.constant 2.000000e+01 : f32
    %48 = vector.broadcast %cst_23 : f32 to vector<1x8xf32>
    %49 = arith.minimumf %47, %48 : vector<1x8xf32>
    %cst_24 = arith.constant 2.000000e+01 : f32
    %50 = vector.broadcast %cst_24 : f32 to vector<1x8xf32>
    %51 = arith.cmpf ogt, %47, %50 : vector<1x8xf32>
    %52 = math.exp %49 : vector<1x8xf32>
    %53 = math.log1p %52 : vector<1x8xf32>
    %54 = arith.select %51, %47, %53 : vector<1x8xi1>, vector<1x8xf32>
    %cst_25 = arith.constant 1.000000e-03 : f32
    %55 = vector.broadcast %cst_25 : f32 to vector<1x8xf32>
    %56 = arith.maximumf %54, %55 : vector<1x8xf32>
    %c0_26 = arith.constant 0 : index
    %c0_27 = arith.constant 0 : index
    %57 = vector.load %arg10[%c0_26, %c0_27] : memref<2x8xf32, #tpu.memory_space<vmem>>, vector<1x8xf32>
    tpu.vector_store %arg10[%c0_26, %c0_27], %46 {strides = array<i32>} : memref<2x8xf32, #tpu.memory_space<vmem>>, vector<1x8xf32>,
    %c1 = arith.constant 1 : index
    %c0_28 = arith.constant 0 : index
    %58 = vector.load %arg10[%c1, %c0_28] : memref<2x8xf32, #tpu.memory_space<vmem>>, vector<1x8xf32>
    tpu.vector_store %arg10[%c1, %c0_28], %56 {strides = array<i32>} : memref<2x8xf32, #tpu.memory_space<vmem>>, vector<1x8xf32>,
    return
  }
  func.func @transform_0(%arg0: i32) -> (i32, i32) {
    %c0_i32 = arith.constant 0 : i32
    %c0_i32_0 = arith.constant 0 : i32
    return %c0_i32, %arg0 : i32, i32
  }
  func.func @transform_1(%arg0: i32) -> (i32, i32) {
    %c0_i32 = arith.constant 0 : i32
    %c0_i32_0 = arith.constant 0 : i32
    %c0_i32_1 = arith.constant 0 : i32
    return %c0_i32, %c0_i32_0 : i32, i32
  }
  func.func @transform_2(%arg0: i32) -> (i32, i32) {
    %c0_i32 = arith.constant 0 : i32
    %c0_i32_0 = arith.constant 0 : i32
    %c0_i32_1 = arith.constant 0 : i32
    return %c0_i32, %c0_i32_0 : i32, i32
  }
  func.func @transform_3(%arg0: i32) -> (i32, i32) {
    %c0_i32 = arith.constant 0 : i32
    %c0_i32_0 = arith.constant 0 : i32
    %c0_i32_1 = arith.constant 0 : i32
    return %c0_i32, %c0_i32_0 : i32, i32
  }
  func.func @transform_4(%arg0: i32) -> (i32, i32) {
    %c0_i32 = arith.constant 0 : i32
    %c0_i32_0 = arith.constant 0 : i32
    %c0_i32_1 = arith.constant 0 : i32
    return %c0_i32, %c0_i32_0 : i32, i32
  }
  func.func @transform_5(%arg0: i32) -> (i32, i32) {
    %c0_i32 = arith.constant 0 : i32
    %c0_i32_0 = arith.constant 0 : i32
    %c0_i32_1 = arith.constant 0 : i32
    return %c0_i32, %c0_i32_0 : i32, i32
  }
  func.func @transform_6(%arg0: i32) -> (i32, i32) {
    %c0_i32 = arith.constant 0 : i32
    %c0_i32_0 = arith.constant 0 : i32
    %c0_i32_1 = arith.constant 0 : i32
    return %c0_i32, %c0_i32_0 : i32, i32
  }
  func.func @transform_7(%arg0: i32) -> (i32, i32) {
    %c0_i32 = arith.constant 0 : i32
    %c0_i32_0 = arith.constant 0 : i32
    %c0_i32_1 = arith.constant 0 : i32
    return %c0_i32, %c0_i32_0 : i32, i32
  }
  func.func @transform_8(%arg0: i32) -> (i32, i32) {
    %c0_i32 = arith.constant 0 : i32
    %c0_i32_0 = arith.constant 0 : i32
    %c0_i32_1 = arith.constant 0 : i32
    return %c0_i32, %c0_i32_0 : i32, i32
  }
  func.func @transform_9(%arg0: i32) -> (i32, i32) {
    %c0_i32 = arith.constant 0 : i32
    %c0_i32_0 = arith.constant 0 : i32
    return %c0_i32, %arg0 : i32, i32
  }
}

</mosaic_0001>

<llo_original>
// kernel: tpu_custom_call.1
$region0: #{tpu_custom_call.1}
  #allocation0 [shape = 'u32[]', space=smem, size = 0x4, offset = 0x4, fixed_abs, tag = 'smem constant byte address 0x4 - core index']
  #allocation1 [shape = 'u32[72,128]{1,0:T(1,128)}', space=vmem, size = 0x9000, scoped, tag = 'internal scratch']
  %s0 = inlined_call_operand.vmem [shape: f32[3,8], index: 0, kind: input, shape index: {}]
  %s1 = inlined_call_operand.vmem [shape: f32[256,3], index: 1, kind: input, shape index: {}]
  %s2 = inlined_call_operand.vmem [shape: f32[256,1], index: 2, kind: input, shape index: {}]
  %s3 = inlined_call_operand.vmem [shape: f32[128,256], index: 3, kind: input, shape index: {}]
  %s4 = inlined_call_operand.vmem [shape: f32[128,1], index: 4, kind: input, shape index: {}]
  %s5 = inlined_call_operand.vmem [shape: f32[128,128], index: 5, kind: input, shape index: {}]
  %s6 = inlined_call_operand.vmem [shape: f32[128,1], index: 6, kind: input, shape index: {}]
  %s7 = inlined_call_operand.vmem [shape: f32[8,128], index: 7, kind: input, shape index: {}]
  %s8 = inlined_call_operand.vmem [shape: f32[8,1], index: 8, kind: input, shape index: {}]
  %s9 = inlined_call_operand.hbm [shape: f32[2,8], index: 9, kind: output, shape index: {}]
  %s10 = sld [smem:[#allocation0]]
  $region46: #{tpu_custom_call.1} parent=0
    _
  %s12 = ssub.s32 1, %s10
  %s13 = scalar_select 0, %s12, %s10
  $region1: #{tpu_custom_call.1} parent=0
    #allocation2 [shape = 'u8[1024]{0}', space=vmem, size = 0x400, scoped, tag = 'output window, operand 0, single buffered']
    #allocation3 [shape = 's32[1]{0}', space=sflag, size = 0x4, scoped, tag = 'scoped memory for tpu_custom_call.1']
    %14 = vsyncpa [#allocation3], 0
    // Predicated region
    $region2: #{tpu_custom_call.1} parent=1 // pred_check
      _
    $region3: #{tpu_custom_call.1} parent=1 // pred_check_branch
      %16 = sbr.rel (0) target = $region5
    $region4: #{tpu_custom_call.1} parent=1 // pred_region
      _
    $region5: #{tpu_custom_call.1} parent=1 // pred_fallthru
      _
    // Predicated region
    $region6: #{tpu_custom_call.1} parent=1 // pred_check
      _
    $region7: #{tpu_custom_call.1} parent=1 // pred_check_branch
      %18 = sbr.rel (0) target = $region9
    $region8: #{tpu_custom_call.1} parent=1 // pred_region
      _
    $region9: #{tpu_custom_call.1} parent=1 // pred_fallthru
      _
    // Predicated region
    $region10: #{tpu_custom_call.1} parent=1 // pred_check
      _
    $region11: #{tpu_custom_call.1} parent=1 // pred_check_branch
      %20 = sbr.rel (0) target = $region13
    $region12: #{tpu_custom_call.1} parent=1 // pred_region
      _
    $region13: #{tpu_custom_call.1} parent=1 // pred_fallthru
      _
    // Predicated region
    $region14: #{tpu_custom_call.1} parent=1 // pred_check
      _
    $region15: #{tpu_custom_call.1} parent=1 // pred_check_branch
      %22 = sbr.rel (0) target = $region17
    $region16: #{tpu_custom_call.1} parent=1 // pred_region
      _
    $region17: #{tpu_custom_call.1} parent=1 // pred_fallthru
      _
    // Predicated region
    $region18: #{tpu_custom_call.1} parent=1 // pred_check
      _
    $region19: #{tpu_custom_call.1} parent=1 // pred_check_branch
      %24 = sbr.rel (0) target = $region21
    $region20: #{tpu_custom_call.1} parent=1 // pred_region
      _
    $region21: #{tpu_custom_call.1} parent=1 // pred_fallthru
      _
    // Predicated region
    $region22: #{tpu_custom_call.1} parent=1 // pred_check
      _
    $region23: #{tpu_custom_call.1} parent=1 // pred_check_branch
      %26 = sbr.rel (0) target = $region25
    $region24: #{tpu_custom_call.1} parent=1 // pred_region
      _
    $region25: #{tpu_custom_call.1} parent=1 // pred_fallthru
      _
    // Predicated region
    $region26: #{tpu_custom_call.1} parent=1 // pred_check
      _
    $region27: #{tpu_custom_call.1} parent=1 // pred_check_branch
      %28 = sbr.rel (0) target = $region29
    $region28: #{tpu_custom_call.1} parent=1 // pred_region
      _
    $region29: #{tpu_custom_call.1} parent=1 // pred_fallthru
      _
    // Predicated region
    $region30: #{tpu_custom_call.1} parent=1 // pred_check
      _
    $region31: #{tpu_custom_call.1} parent=1 // pred_check_branch
      %30 = sbr.rel (0) target = $region33
    $region32: #{tpu_custom_call.1} parent=1 // pred_region
      _
    $region33: #{tpu_custom_call.1} parent=1 // pred_fallthru
      _
    // Predicated region
    $region34: #{tpu_custom_call.1} parent=1 // pred_check
      _
    $region35: #{tpu_custom_call.1} parent=1 // pred_check_branch
      %32 = sbr.rel (0) target = $region37
    $region36: #{tpu_custom_call.1} parent=1 // pred_region
      _
    $region37: #{tpu_custom_call.1} parent=1 // pred_fallthru
      _
    %v33 = vld [vmem:[%s0] sm:$0x7]
    %v34 = vld [vmem:[%s1] sm:$0xff]
    %v35 = vld [vmem:[%s1 + $0x8] sm:$0xff]
    %v36 = vld [vmem:[%s1 + $0x10] sm:$0xff]
    %v37 = vld [vmem:[%s1 + $0x18] sm:$0xff]
    %v38 = vld [vmem:[%s1 + $0x20] sm:$0xff]
    %v39 = vld [vmem:[%s1 + $0x28] sm:$0xff]
    %v40 = vld [vmem:[%s1 + $0x30] sm:$0xff]
    %v41 = vld [vmem:[%s1 + $0x38] sm:$0xff]
    %v42 = vld [vmem:[%s1 + $0x40] sm:$0xff]
    %v43 = vld [vmem:[%s1 + $0x48] sm:$0xff]
    %v44 = vld [vmem:[%s1 + $0x50] sm:$0xff]
    %v45 = vld [vmem:[%s1 + $0x58] sm:$0xff]
    %v46 = vld [vmem:[%s1 + $0x60] sm:$0xff]
    %v47 = vld [vmem:[%s1 + $0x68] sm:$0xff]
    %v48 = vld [vmem:[%s1 + $0x70] sm:$0xff]
    %v49 = vld [vmem:[%s1 + $0x78] sm:$0xff]
    %v50 = vld [vmem:[%s1 + $0x80] sm:$0xff]
    %v51 = vld [vmem:[%s1 + $0x88] sm:$0xff]
    %v52 = vld [vmem:[%s1 + $0x90] sm:$0xff]
    %v53 = vld [vmem:[%s1 + $0x98] sm:$0xff]
    %v54 = vld [vmem:[%s1 + $0xa0] sm:$0xff]
    %v55 = vld [vmem:[%s1 + $0xa8] sm:$0xff]
    %v56 = vld [vmem:[%s1 + $0xb0] sm:$0xff]
    %v57 = vld [vmem:[%s1 + $0xb8] sm:$0xff]
    %v58 = vld [vmem:[%s1 + $0xc0] sm:$0xff]
    %v59 = vld [vmem:[%s1 + $0xc8] sm:$0xff]
    %v60 = vld [vmem:[%s1 + $0xd0] sm:$0xff]
    %v61 = vld [vmem:[%s1 + $0xd8] sm:$0xff]
    %v62 = vld [vmem:[%s1 + $0xe0] sm:$0xff]
    %v63 = vld [vmem:[%s1 + $0xe8] sm:$0xff]
    %v64 = vld [vmem:[%s1 + $0xf0] sm:$0xff]
    %v65 = vld [vmem:[%s1 + $0xf8] sm:$0xff]
    %67 = vset.pattern.permute.xlu0 0
    %68 = vperm.xlu0 %67, %v34
    %v69 = vpop.permute.xlu0 %68
    %72 = vset.pattern.permute.xlu0 0
    %73 = vperm.xlu0 %72, %v35
    %v74 = vpop.permute.xlu0 %73
    %77 = vset.pattern.permute.xlu0 0
    %78 = vperm.xlu0 %77, %v36
    %v79 = vpop.permute.xlu0 %78
    %82 = vset.pattern.permute.xlu0 0
    %83 = vperm.xlu0 %82, %v37
    %v84 = vpop.permute.xlu0 %83
    %87 = vset.pattern.permute.xlu0 0
    %88 = vperm.xlu0 %87, %v38
    %v89 = vpop.permute.xlu0 %88
    %92 = vset.pattern.permute.xlu0 0
    %93 = vperm.xlu0 %92, %v39
    %v94 = vpop.permute.xlu0 %93
    %97 = vset.pattern.permute.xlu0 0
    %98 = vperm.xlu0 %97, %v40
    %v99 = vpop.permute.xlu0 %98
    %102 = vset.pattern.permute.xlu0 0
    %103 = vperm.xlu0 %102, %v41
    %v104 = vpop.permute.xlu0 %103
    %107 = vset.pattern.permute.xlu0 0
    %108 = vperm.xlu0 %107, %v42
    %v109 = vpop.permute.xlu0 %108
    %112 = vset.pattern.permute.xlu0 0
    %113 = vperm.xlu0 %112, %v43
    %v114 = vpop.permute.xlu0 %113
    %117 = vset.pattern.permute.xlu0 0
    %118 = vperm.xlu0 %117, %v44
    %v119 = vpop.permute.xlu0 %118
    %122 = vset.pattern.permute.xlu0 0
    %123 = vperm.xlu0 %122, %v45
    %v124 = vpop.permute.xlu0 %123
    %127 = vset.pattern.permute.xlu0 0
    %128 = vperm.xlu0 %127, %v46
    %v129 = vpop.permute.xlu0 %128
    %132 = vset.pattern.permute.xlu0 0
    %133 = vperm.xlu0 %132, %v47
    %v134 = vpop.permute.xlu0 %133
    %137 = vset.pattern.permute.xlu0 0
    %138 = vperm.xlu0 %137, %v48
    %v139 = vpop.permute.xlu0 %138
    %142 = vset.pattern.permute.xlu0 0
    %143 = vperm.xlu0 %142, %v49
    %v144 = vpop.permute.xlu0 %143
    %147 = vset.pattern.permute.xlu0 0
    %148 = vperm.xlu0 %147, %v50
    %v149 = vpop.permute.xlu0 %148
    %152 = vset.pattern.permute.xlu0 0
    %153 = vperm.xlu0 %152, %v51
    %v154 = vpop.permute.xlu0 %153
    %157 = vset.pattern.permute.xlu0 0
    %158 = vperm.xlu0 %157, %v52
    %v159 = vpop.permute.xlu0 %158
    %162 = vset.pattern.permute.xlu0 0
    %163 = vperm.xlu0 %162, %v53
    %v164 = vpop.permute.xlu0 %163
    %167 = vset.pattern.permute.xlu0 0
    %168 = vperm.xlu0 %167, %v54
    %v169 = vpop.permute.xlu0 %168
    %172 = vset.pattern.permute.xlu0 0
    %173 = vperm.xlu0 %172, %v55
    %v174 = vpop.permute.xlu0 %173
    %177 = vset.pattern.permute.xlu0 0
    %178 = vperm.xlu0 %177, %v56
    %v179 = vpop.permute.xlu0 %178
    %182 = vset.pattern.permute.xlu0 0
    %183 = vperm.xlu0 %182, %v57
    %v184 = vpop.permute.xlu0 %183
    %187 = vset.pattern.permute.xlu0 0
    %188 = vperm.xlu0 %187, %v58
    %v189 = vpop.permute.xlu0 %188
    %192 = vset.pattern.permute.xlu0 0
    %193 = vperm.xlu0 %192, %v59
    %v194 = vpop.permute.xlu0 %193
    %197 = vset.pattern.permute.xlu0 0
    %198 = vperm.xlu0 %197, %v60
    %v199 = vpop.permute.xlu0 %198
    %202 = vset.pattern.permute.xlu0 0
    %203 = vperm.xlu0 %202, %v61
    %v204 = vpop.permute.xlu0 %203
    %207 = vset.pattern.permute.xlu0 0
    %208 = vperm.xlu0 %207, %v62
    %v209 = vpop.permute.xlu0 %208
    %212 = vset.pattern.permute.xlu0 0
    %213 = vperm.xlu0 %212, %v63
    %v214 = vpop.permute.xlu0 %213
    %217 = vset.pattern.permute.xlu0 0
    %218 = vperm.xlu0 %217, %v64
    %v219 = vpop.permute.xlu0 %218
    %222 = vset.pattern.permute.xlu0 0
    %223 = vperm.xlu0 %222, %v65
    %v224 = vpop.permute.xlu0 %223
    %v226 = vperm.slane %v33, 0
    %v227 = vmul.f32 %v69, %v226
    %v228 = vmul.f32 %v74, %v226
    %v229 = vmul.f32 %v79, %v226
    %v230 = vmul.f32 %v84, %v226
    %v231 = vmul.f32 %v89, %v226
    %v232 = vmul.f32 %v94, %v226
    %v233 = vmul.f32 %v99, %v226
    %v234 = vmul.f32 %v104, %v226
    %v235 = vmul.f32 %v109, %v226
    %v236 = vmul.f32 %v114, %v226
    %v237 = vmul.f32 %v119, %v226
    %v238 = vmul.f32 %v124, %v226
    %v239 = vmul.f32 %v129, %v226
    %v240 = vmul.f32 %v134, %v226
    %v241 = vmul.f32 %v139, %v226
    %v242 = vmul.f32 %v144, %v226
    %v243 = vmul.f32 %v149, %v226
    %v244 = vmul.f32 %v154, %v226
    %v245 = vmul.f32 %v159, %v226
    %v246 = vmul.f32 %v164, %v226
    %v247 = vmul.f32 %v169, %v226
    %v248 = vmul.f32 %v174, %v226
    %v249 = vmul.f32 %v179, %v226
    %v250 = vmul.f32 %v184, %v226
    %v251 = vmul.f32 %v189, %v226
    %v252 = vmul.f32 %v194, %v226
    %v253 = vmul.f32 %v199, %v226
    %v254 = vmul.f32 %v204, %v226
    %v255 = vmul.f32 %v209, %v226
    %v256 = vmul.f32 %v214, %v226
    %v257 = vmul.f32 %v219, %v226
    %v258 = vmul.f32 %v224, %v226
    %259 = vset.pattern.permute.xlu0 1
    %260 = vperm.xlu0 %259, %v34
    %v261 = vpop.permute.xlu0 %260
    %263 = vset.pattern.permute.xlu0 1
    %264 = vperm.xlu0 %263, %v35
    %v265 = vpop.permute.xlu0 %264
    %267 = vset.pattern.permute.xlu0 1
    %268 = vperm.xlu0 %267, %v36
    %v269 = vpop.permute.xlu0 %268
    %271 = vset.pattern.permute.xlu0 1
    %272 = vperm.xlu0 %271, %v37
    %v273 = vpop.permute.xlu0 %272
    %275 = vset.pattern.permute.xlu0 1
    %276 = vperm.xlu0 %275, %v38
    %v277 = vpop.permute.xlu0 %276
    %279 = vset.pattern.permute.xlu0 1
    %280 = vperm.xlu0 %279, %v39
    %v281 = vpop.permute.xlu0 %280
    %283 = vset.pattern.permute.xlu0 1
    %284 = vperm.xlu0 %283, %v40
    %v285 = vpop.permute.xlu0 %284
    %287 = vset.pattern.permute.xlu0 1
    %288 = vperm.xlu0 %287, %v41
    %v289 = vpop.permute.xlu0 %288
    %291 = vset.pattern.permute.xlu0 1
    %292 = vperm.xlu0 %291, %v42
    %v293 = vpop.permute.xlu0 %292
    %295 = vset.pattern.permute.xlu0 1
    %296 = vperm.xlu0 %295, %v43
    %v297 = vpop.permute.xlu0 %296
    %299 = vset.pattern.permute.xlu0 1
    %300 = vperm.xlu0 %299, %v44
    %v301 = vpop.permute.xlu0 %300
    %303 = vset.pattern.permute.xlu0 1
    %304 = vperm.xlu0 %303, %v45
    %v305 = vpop.permute.xlu0 %304
    %307 = vset.pattern.permute.xlu0 1
    %308 = vperm.xlu0 %307, %v46
    %v309 = vpop.permute.xlu0 %308
    %311 = vset.pattern.permute.xlu0 1
    %312 = vperm.xlu0 %311, %v47
    %v313 = vpop.permute.xlu0 %312
    %315 = vset.pattern.permute.xlu0 1
    %316 = vperm.xlu0 %315, %v48
    %v317 = vpop.permute.xlu0 %316
    %319 = vset.pattern.permute.xlu0 1
    %320 = vperm.xlu0 %319, %v49
    %v321 = vpop.permute.xlu0 %320
    %323 = vset.pattern.permute.xlu0 1
    %324 = vperm.xlu0 %323, %v50
    %v325 = vpop.permute.xlu0 %324
    %327 = vset.pattern.permute.xlu0 1
    %328 = vperm.xlu0 %327, %v51
    %v329 = vpop.permute.xlu0 %328
    %331 = vset.pattern.permute.xlu0 1
    %332 = vperm.xlu0 %331, %v52
    %v333 = vpop.permute.xlu0 %332
    %335 = vset.pattern.permute.xlu0 1
    %336 = vperm.xlu0 %335, %v53
    %v337 = vpop.permute.xlu0 %336
    %339 = vset.pattern.permute.xlu0 1
    %340 = vperm.xlu0 %339, %v54
    %v341 = vpop.permute.xlu0 %340
    %343 = vset.pattern.permute.xlu0 1
    %344 = vperm.xlu0 %343, %v55
    %v345 = vpop.permute.xlu0 %344
    %347 = vset.pattern.permute.xlu0 1
    %348 = vperm.xlu0 %347, %v56
    %v349 = vpop.permute.xlu0 %348
    %351 = vset.pattern.permute.xlu0 1
    %352 = vperm.xlu0 %351, %v57
    %v353 = vpop.permute.xlu0 %352
    %355 = vset.pattern.permute.xlu0 1
    %356 = vperm.xlu0 %355, %v58
    %v357 = vpop.permute.xlu0 %356
    %359 = vset.pattern.permute.xlu0 1
    %360 = vperm.xlu0 %359, %v59
    %v361 = vpop.permute.xlu0 %360
    %363 = vset.pattern.permute.xlu0 1
    %364 = vperm.xlu0 %363, %v60
    %v365 = vpop.permute.xlu0 %364
    %367 = vset.pattern.permute.xlu0 1
    %368 = vperm.xlu0 %367, %v61
    %v369 = vpop.permute.xlu0 %368
    %371 = vset.pattern.permute.xlu0 1
    %372 = vperm.xlu0 %371, %v62
    %v373 = vpop.permute.xlu0 %372
    %375 = vset.pattern.permute.xlu0 1
    %376 = vperm.xlu0 %375, %v63
    %v377 = vpop.permute.xlu0 %376
    %379 = vset.pattern.permute.xlu0 1
    %380 = vperm.xlu0 %379, %v64
    %v381 = vpop.permute.xlu0 %380
    %383 = vset.pattern.permute.xlu0 1
    %384 = vperm.xlu0 %383, %v65
    %v385 = vpop.permute.xlu0 %384
    %v387 = vperm.slane %v33, 1
    %v388 = vmul.f32 %v261, %v387
    %v389 = vmul.f32 %v265, %v387
    %v390 = vmul.f32 %v269, %v387
    %v391 = vmul.f32 %v273, %v387
    %v392 = vmul.f32 %v277, %v387
    %v393 = vmul.f32 %v281, %v387
    %v394 = vmul.f32 %v285, %v387
    %v395 = vmul.f32 %v289, %v387
    %v396 = vmul.f32 %v293, %v387
    %v397 = vmul.f32 %v297, %v387
    %v398 = vmul.f32 %v301, %v387
    %v399 = vmul.f32 %v305, %v387
    %v400 = vmul.f32 %v309, %v387
    %v401 = vmul.f32 %v313, %v387
    %v402 = vmul.f32 %v317, %v387
    %v403 = vmul.f32 %v321, %v387
    %v404 = vmul.f32 %v325, %v387
    %v405 = vmul.f32 %v329, %v387
    %v406 = vmul.f32 %v333, %v387
    %v407 = vmul.f32 %v337, %v387
    %v408 = vmul.f32 %v341, %v387
    %v409 = vmul.f32 %v345, %v387
    %v410 = vmul.f32 %v349, %v387
    %v411 = vmul.f32 %v353, %v387
    %v412 = vmul.f32 %v357, %v387
    %v413 = vmul.f32 %v361, %v387
    %v414 = vmul.f32 %v365, %v387
    %v415 = vmul.f32 %v369, %v387
    %v416 = vmul.f32 %v373, %v387
    %v417 = vmul.f32 %v377, %v387
    %v418 = vmul.f32 %v381, %v387
    %v419 = vmul.f32 %v385, %v387
    %v420 = vadd.f32 %v227, %v388
    %v421 = vadd.f32 %v228, %v389
    %v422 = vadd.f32 %v229, %v390
    %v423 = vadd.f32 %v230, %v391
    %v424 = vadd.f32 %v231, %v392
    %v425 = vadd.f32 %v232, %v393
    %v426 = vadd.f32 %v233, %v394
    %v427 = vadd.f32 %v234, %v395
    %v428 = vadd.f32 %v235, %v396
    %v429 = vadd.f32 %v236, %v397
    %v430 = vadd.f32 %v237, %v398
    %v431 = vadd.f32 %v238, %v399
    %v432 = vadd.f32 %v239, %v400
    %v433 = vadd.f32 %v240, %v401
    %v434 = vadd.f32 %v241, %v402
    %v435 = vadd.f32 %v242, %v403
    %v436 = vadd.f32 %v243, %v404
    %v437 = vadd.f32 %v244, %v405
    %v438 = vadd.f32 %v245, %v406
    %v439 = vadd.f32 %v246, %v407
    %v440 = vadd.f32 %v247, %v408
    %v441 = vadd.f32 %v248, %v409
    %v442 = vadd.f32 %v249, %v410
    %v443 = vadd.f32 %v250, %v411
    %v444 = vadd.f32 %v251, %v412
    %v445 = vadd.f32 %v252, %v413
    %v446 = vadd.f32 %v253, %v414
    %v447 = vadd.f32 %v254, %v415
    %v448 = vadd.f32 %v255, %v416
    %v449 = vadd.f32 %v256, %v417
    %v450 = vadd.f32 %v257, %v418
    %v451 = vadd.f32 %v258, %v419
    %452 = vset.pattern.permute.xlu0 2
    %453 = vperm.xlu0 %452, %v34
    %v454 = vpop.permute.xlu0 %453
    %456 = vset.pattern.permute.xlu0 2
    %457 = vperm.xlu0 %456, %v35
    %v458 = vpop.permute.xlu0 %457
    %460 = vset.pattern.permute.xlu0 2
    %461 = vperm.xlu0 %460, %v36
    %v462 = vpop.permute.xlu0 %461
    %464 = vset.pattern.permute.xlu0 2
    %465 = vperm.xlu0 %464, %v37
    %v466 = vpop.permute.xlu0 %465
    %468 = vset.pattern.permute.xlu0 2
    %469 = vperm.xlu0 %468, %v38
    %v470 = vpop.permute.xlu0 %469
    %472 = vset.pattern.permute.xlu0 2
    %473 = vperm.xlu0 %472, %v39
    %v474 = vpop.permute.xlu0 %473
    %476 = vset.pattern.permute.xlu0 2
    %477 = vperm.xlu0 %476, %v40
    %v478 = vpop.permute.xlu0 %477
    %480 = vset.pattern.permute.xlu0 2
    %481 = vperm.xlu0 %480, %v41
    %v482 = vpop.permute.xlu0 %481
    %484 = vset.pattern.permute.xlu0 2
    %485 = vperm.xlu0 %484, %v42
    %v486 = vpop.permute.xlu0 %485
    %488 = vset.pattern.permute.xlu0 2
    %489 = vperm.xlu0 %488, %v43
    %v490 = vpop.permute.xlu0 %489
    %492 = vset.pattern.permute.xlu0 2
    %493 = vperm.xlu0 %492, %v44
    %v494 = vpop.permute.xlu0 %493
    %496 = vset.pattern.permute.xlu0 2
    %497 = vperm.xlu0 %496, %v45
    %v498 = vpop.permute.xlu0 %497
    %500 = vset.pattern.permute.xlu0 2
    %501 = vperm.xlu0 %500, %v46
    %v502 = vpop.permute.xlu0 %501
    %504 = vset.pattern.permute.xlu0 2
    %505 = vperm.xlu0 %504, %v47
    %v506 = vpop.permute.xlu0 %505
    %508 = vset.pattern.permute.xlu0 2
    %509 = vperm.xlu0 %508, %v48
    %v510 = vpop.permute.xlu0 %509
    %512 = vset.pattern.permute.xlu0 2
    %513 = vperm.xlu0 %512, %v49
    %v514 = vpop.permute.xlu0 %513
    %516 = vset.pattern.permute.xlu0 2
    %517 = vperm.xlu0 %516, %v50
    %v518 = vpop.permute.xlu0 %517
    %520 = vset.pattern.permute.xlu0 2
    %521 = vperm.xlu0 %520, %v51
    %v522 = vpop.permute.xlu0 %521
    %524 = vset.pattern.permute.xlu0 2
    %525 = vperm.xlu0 %524, %v52
    %v526 = vpop.permute.xlu0 %525
    %528 = vset.pattern.permute.xlu0 2
    %529 = vperm.xlu0 %528, %v53
    %v530 = vpop.permute.xlu0 %529
    %532 = vset.pattern.permute.xlu0 2
    %533 = vperm.xlu0 %532, %v54
    %v534 = vpop.permute.xlu0 %533
    %536 = vset.pattern.permute.xlu0 2
    %537 = vperm.xlu0 %536, %v55
    %v538 = vpop.permute.xlu0 %537
    %540 = vset.pattern.permute.xlu0 2
    %541 = vperm.xlu0 %540, %v56
    %v542 = vpop.permute.xlu0 %541
    %544 = vset.pattern.permute.xlu0 2
    %545 = vperm.xlu0 %544, %v57
    %v546 = vpop.permute.xlu0 %545
    %548 = vset.pattern.permute.xlu0 2
    %549 = vperm.xlu0 %548, %v58
    %v550 = vpop.permute.xlu0 %549
    %552 = vset.pattern.permute.xlu0 2
    %553 = vperm.xlu0 %552, %v59
    %v554 = vpop.permute.xlu0 %553
    %556 = vset.pattern.permute.xlu0 2
    %557 = vperm.xlu0 %556, %v60
    %v558 = vpop.permute.xlu0 %557
    %560 = vset.pattern.permute.xlu0 2
    %561 = vperm.xlu0 %560, %v61
    %v562 = vpop.permute.xlu0 %561
    %564 = vset.pattern.permute.xlu0 2
    %565 = vperm.xlu0 %564, %v62
    %v566 = vpop.permute.xlu0 %565
    %568 = vset.pattern.permute.xlu0 2
    %569 = vperm.xlu0 %568, %v63
    %v570 = vpop.permute.xlu0 %569
    %572 = vset.pattern.permute.xlu0 2
    %573 = vperm.xlu0 %572, %v64
    %v574 = vpop.permute.xlu0 %573
    %576 = vset.pattern.permute.xlu0 2
    %577 = vperm.xlu0 %576, %v65
    %v578 = vpop.permute.xlu0 %577
    %v580 = vperm.slane %v33, 2
    %v581 = vmul.f32 %v454, %v580
    %v582 = vmul.f32 %v458, %v580
    %v583 = vmul.f32 %v462, %v580
    %v584 = vmul.f32 %v466, %v580
    %v585 = vmul.f32 %v470, %v580
    %v586 = vmul.f32 %v474, %v580
    %v587 = vmul.f32 %v478, %v580
    %v588 = vmul.f32 %v482, %v580
    %v589 = vmul.f32 %v486, %v580
    %v590 = vmul.f32 %v490, %v580
    %v591 = vmul.f32 %v494, %v580
    %v592 = vmul.f32 %v498, %v580
    %v593 = vmul.f32 %v502, %v580
    %v594 = vmul.f32 %v506, %v580
    %v595 = vmul.f32 %v510, %v580
    %v596 = vmul.f32 %v514, %v580
    %v597 = vmul.f32 %v518, %v580
    %v598 = vmul.f32 %v522, %v580
    %v599 = vmul.f32 %v526, %v580
    %v600 = vmul.f32 %v530, %v580
    %v601 = vmul.f32 %v534, %v580
    %v602 = vmul.f32 %v538, %v580
    %v603 = vmul.f32 %v542, %v580
    %v604 = vmul.f32 %v546, %v580
    %v605 = vmul.f32 %v550, %v580
    %v606 = vmul.f32 %v554, %v580
    %v607 = vmul.f32 %v558, %v580
    %v608 = vmul.f32 %v562, %v580
    %v609 = vmul.f32 %v566, %v580
    %v610 = vmul.f32 %v570, %v580
    %v611 = vmul.f32 %v574, %v580
    %v612 = vmul.f32 %v578, %v580
    %v613 = vadd.f32 %v420, %v581
    %v614 = vadd.f32 %v421, %v582
    %v615 = vadd.f32 %v422, %v583
    %v616 = vadd.f32 %v423, %v584
    %v617 = vadd.f32 %v424, %v585
    %v618 = vadd.f32 %v425, %v586
    %v619 = vadd.f32 %v426, %v587
    %v620 = vadd.f32 %v427, %v588
    %v621 = vadd.f32 %v428, %v589
    %v622 = vadd.f32 %v429, %v590
    %v623 = vadd.f32 %v430, %v591
    %v624 = vadd.f32 %v431, %v592
    %v625 = vadd.f32 %v432, %v593
    %v626 = vadd.f32 %v433, %v594
    %v627 = vadd.f32 %v434, %v595
    %v628 = vadd.f32 %v435, %v596
    %v629 = vadd.f32 %v436, %v597
    %v630 = vadd.f32 %v437, %v598
    %v631 = vadd.f32 %v438, %v599
    %v632 = vadd.f32 %v439, %v600
    %v633 = vadd.f32 %v440, %v601
    %v634 = vadd.f32 %v441, %v602
    %v635 = vadd.f32 %v442, %v603
    %v636 = vadd.f32 %v443, %v604
    %v637 = vadd.f32 %v444, %v605
    %v638 = vadd.f32 %v445, %v606
    %v639 = vadd.f32 %v446, %v607
    %v640 = vadd.f32 %v447, %v608
    %v641 = vadd.f32 %v448, %v609
    %v642 = vadd.f32 %v449, %v610
    %v643 = vadd.f32 %v450, %v611
    %v644 = vadd.f32 %v451, %v612
    %v645 = vld [vmem:[%s2] sm:$0xff]
    %v646 = vld [vmem:[%s2 + $0x8] sm:$0xff]
    %v647 = vld [vmem:[%s2 + $0x10] sm:$0xff]
    %v648 = vld [vmem:[%s2 + $0x18] sm:$0xff]
    %v649 = vld [vmem:[%s2 + $0x20] sm:$0xff]
    %v650 = vld [vmem:[%s2 + $0x28] sm:$0xff]
    %v651 = vld [vmem:[%s2 + $0x30] sm:$0xff]
    %v652 = vld [vmem:[%s2 + $0x38] sm:$0xff]
    %v653 = vld [vmem:[%s2 + $0x40] sm:$0xff]
    %v654 = vld [vmem:[%s2 + $0x48] sm:$0xff]
    %v655 = vld [vmem:[%s2 + $0x50] sm:$0xff]
    %v656 = vld [vmem:[%s2 + $0x58] sm:$0xff]
    %v657 = vld [vmem:[%s2 + $0x60] sm:$0xff]
    %v658 = vld [vmem:[%s2 + $0x68] sm:$0xff]
    %v659 = vld [vmem:[%s2 + $0x70] sm:$0xff]
    %v660 = vld [vmem:[%s2 + $0x78] sm:$0xff]
    %v661 = vld [vmem:[%s2 + $0x80] sm:$0xff]
    %v662 = vld [vmem:[%s2 + $0x88] sm:$0xff]
    %v663 = vld [vmem:[%s2 + $0x90] sm:$0xff]
    %v664 = vld [vmem:[%s2 + $0x98] sm:$0xff]
    %v665 = vld [vmem:[%s2 + $0xa0] sm:$0xff]
    %v666 = vld [vmem:[%s2 + $0xa8] sm:$0xff]
    %v667 = vld [vmem:[%s2 + $0xb0] sm:$0xff]
    %v668 = vld [vmem:[%s2 + $0xb8] sm:$0xff]
    %v669 = vld [vmem:[%s2 + $0xc0] sm:$0xff]
    %v670 = vld [vmem:[%s2 + $0xc8] sm:$0xff]
    %v671 = vld [vmem:[%s2 + $0xd0] sm:$0xff]
    %v672 = vld [vmem:[%s2 + $0xd8] sm:$0xff]
    %v673 = vld [vmem:[%s2 + $0xe0] sm:$0xff]
    %v674 = vld [vmem:[%s2 + $0xe8] sm:$0xff]
    %v675 = vld [vmem:[%s2 + $0xf0] sm:$0xff]
    %v676 = vld [vmem:[%s2 + $0xf8] sm:$0xff]
    %678 = vset.pattern.permute.xlu0 0
    %679 = vperm.xlu0 %678, %v645
    %v680 = vpop.permute.xlu0 %679
    %683 = vset.pattern.permute.xlu0 0
    %684 = vperm.xlu0 %683, %v646
    %v685 = vpop.permute.xlu0 %684
    %688 = vset.pattern.permute.xlu0 0
    %689 = vperm.xlu0 %688, %v647
    %v690 = vpop.permute.xlu0 %689
    %693 = vset.pattern.permute.xlu0 0
    %694 = vperm.xlu0 %693, %v648
    %v695 = vpop.permute.xlu0 %694
    %698 = vset.pattern.permute.xlu0 0
    %699 = vperm.xlu0 %698, %v649
    %v700 = vpop.permute.xlu0 %699
    %703 = vset.pattern.permute.xlu0 0
    %704 = vperm.xlu0 %703, %v650
    %v705 = vpop.permute.xlu0 %704
    %708 = vset.pattern.permute.xlu0 0
    %709 = vperm.xlu0 %708, %v651
    %v710 = vpop.permute.xlu0 %709
    %713 = vset.pattern.permute.xlu0 0
    %714 = vperm.xlu0 %713, %v652
    %v715 = vpop.permute.xlu0 %714
    %718 = vset.pattern.permute.xlu0 0
    %719 = vperm.xlu0 %718, %v653
    %v720 = vpop.permute.xlu0 %719
    %723 = vset.pattern.permute.xlu0 0
    %724 = vperm.xlu0 %723, %v654
    %v725 = vpop.permute.xlu0 %724
    %728 = vset.pattern.permute.xlu0 0
    %729 = vperm.xlu0 %728, %v655
    %v730 = vpop.permute.xlu0 %729
    %733 = vset.pattern.permute.xlu0 0
    %734 = vperm.xlu0 %733, %v656
    %v735 = vpop.permute.xlu0 %734
    %738 = vset.pattern.permute.xlu0 0
    %739 = vperm.xlu0 %738, %v657
    %v740 = vpop.permute.xlu0 %739
    %743 = vset.pattern.permute.xlu0 0
    %744 = vperm.xlu0 %743, %v658
    %v745 = vpop.permute.xlu0 %744
    %748 = vset.pattern.permute.xlu0 0
    %749 = vperm.xlu0 %748, %v659
    %v750 = vpop.permute.xlu0 %749
    %753 = vset.pattern.permute.xlu0 0
    %754 = vperm.xlu0 %753, %v660
    %v755 = vpop.permute.xlu0 %754
    %758 = vset.pattern.permute.xlu0 0
    %759 = vperm.xlu0 %758, %v661
    %v760 = vpop.permute.xlu0 %759
    %763 = vset.pattern.permute.xlu0 0
    %764 = vperm.xlu0 %763, %v662
    %v765 = vpop.permute.xlu0 %764
    %768 = vset.pattern.permute.xlu0 0
    %769 = vperm.xlu0 %768, %v663
    %v770 = vpop.permute.xlu0 %769
    %773 = vset.pattern.permute.xlu0 0
    %774 = vperm.xlu0 %773, %v664
    %v775 = vpop.permute.xlu0 %774
    %778 = vset.pattern.permute.xlu0 0
    %779 = vperm.xlu0 %778, %v665
    %v780 = vpop.permute.xlu0 %779
    %783 = vset.pattern.permute.xlu0 0
    %784 = vperm.xlu0 %783, %v666
    %v785 = vpop.permute.xlu0 %784
    %788 = vset.pattern.permute.xlu0 0
    %789 = vperm.xlu0 %788, %v667
    %v790 = vpop.permute.xlu0 %789
    %793 = vset.pattern.permute.xlu0 0
    %794 = vperm.xlu0 %793, %v668
    %v795 = vpop.permute.xlu0 %794
    %798 = vset.pattern.permute.xlu0 0
    %799 = vperm.xlu0 %798, %v669
    %v800 = vpop.permute.xlu0 %799
    %803 = vset.pattern.permute.xlu0 0
    %804 = vperm.xlu0 %803, %v670
    %v805 = vpop.permute.xlu0 %804
    %808 = vset.pattern.permute.xlu0 0
    %809 = vperm.xlu0 %808, %v671
    %v810 = vpop.permute.xlu0 %809
    %813 = vset.pattern.permute.xlu0 0
    %814 = vperm.xlu0 %813, %v672
    %v815 = vpop.permute.xlu0 %814
    %818 = vset.pattern.permute.xlu0 0
    %819 = vperm.xlu0 %818, %v673
    %v820 = vpop.permute.xlu0 %819
    %823 = vset.pattern.permute.xlu0 0
    %824 = vperm.xlu0 %823, %v674
    %v825 = vpop.permute.xlu0 %824
    %828 = vset.pattern.permute.xlu0 0
    %829 = vperm.xlu0 %828, %v675
    %v830 = vpop.permute.xlu0 %829
    %833 = vset.pattern.permute.xlu0 0
    %834 = vperm.xlu0 %833, %v676
    %v835 = vpop.permute.xlu0 %834
    %v837 = vadd.f32 %v613, %v680
    %v838 = vadd.f32 %v614, %v685
    %v839 = vadd.f32 %v615, %v690
    %v840 = vadd.f32 %v616, %v695
    %v841 = vadd.f32 %v617, %v700
    %v842 = vadd.f32 %v618, %v705
    %v843 = vadd.f32 %v619, %v710
    %v844 = vadd.f32 %v620, %v715
    %v845 = vadd.f32 %v621, %v720
    %v846 = vadd.f32 %v622, %v725
    %v847 = vadd.f32 %v623, %v730
    %v848 = vadd.f32 %v624, %v735
    %v849 = vadd.f32 %v625, %v740
    %v850 = vadd.f32 %v626, %v745
    %v851 = vadd.f32 %v627, %v750
    %v852 = vadd.f32 %v628, %v755
    %v853 = vadd.f32 %v629, %v760
    %v854 = vadd.f32 %v630, %v765
    %v855 = vadd.f32 %v631, %v770
    %v856 = vadd.f32 %v632, %v775
    %v857 = vadd.f32 %v633, %v780
    %v858 = vadd.f32 %v634, %v785
    %v859 = vadd.f32 %v635, %v790
    %v860 = vadd.f32 %v636, %v795
    %v861 = vadd.f32 %v637, %v800
    %v862 = vadd.f32 %v638, %v805
    %v863 = vadd.f32 %v639, %v810
    %v864 = vadd.f32 %v640, %v815
    %v865 = vadd.f32 %v641, %v820
    %v866 = vadd.f32 %v642, %v825
    %v867 = vadd.f32 %v643, %v830
    %v868 = vadd.f32 %v644, %v835
    %v869 = vmax.f32 %v837, 0.0
    %v870 = vmax.f32 %v838, 0.0
    %v871 = vmax.f32 %v839, 0.0
    %v872 = vmax.f32 %v840, 0.0
    %v873 = vmax.f32 %v841, 0.0
    %v874 = vmax.f32 %v842, 0.0
    %v875 = vmax.f32 %v843, 0.0
    %v876 = vmax.f32 %v844, 0.0
    %v877 = vmax.f32 %v845, 0.0
    %v878 = vmax.f32 %v846, 0.0
    %v879 = vmax.f32 %v847, 0.0
    %v880 = vmax.f32 %v848, 0.0
    %v881 = vmax.f32 %v849, 0.0
    %v882 = vmax.f32 %v850, 0.0
    %v883 = vmax.f32 %v851, 0.0
    %v884 = vmax.f32 %v852, 0.0
    %v885 = vmax.f32 %v853, 0.0
    %v886 = vmax.f32 %v854, 0.0
    %v887 = vmax.f32 %v855, 0.0
    %v888 = vmax.f32 %v856, 0.0
    %v889 = vmax.f32 %v857, 0.0
    %v890 = vmax.f32 %v858, 0.0
    %v891 = vmax.f32 %v859, 0.0
    %v892 = vmax.f32 %v860, 0.0
    %v893 = vmax.f32 %v861, 0.0
    %v894 = vmax.f32 %v862, 0.0
    %v895 = vmax.f32 %v863, 0.0
    %v896 = vmax.f32 %v864, 0.0
    %v897 = vmax.f32 %v865, 0.0
    %v898 = vmax.f32 %v866, 0.0
    %v899 = vmax.f32 %v867, 0.0
    %v900 = vmax.f32 %v868, 0.0
    %v901 = vld [vmem:[%s3] sm:$0xff]
    %v902 = vld [vmem:[%s3 + $0x8] sm:$0xff]
    %v903 = vld [vmem:[%s3 + $0x10] sm:$0xff]
    %v904 = vld [vmem:[%s3 + $0x18] sm:$0xff]
    %v905 = vld [vmem:[%s3 + $0x20] sm:$0xff]
    %v906 = vld [vmem:[%s3 + $0x28] sm:$0xff]
    %v907 = vld [vmem:[%s3 + $0x30] sm:$0xff]
    %v908 = vld [vmem:[%s3 + $0x38] sm:$0xff]
    %v909 = vld [vmem:[%s3 + $0x40] sm:$0xff]
    %v910 = vld [vmem:[%s3 + $0x48] sm:$0xff]
    %v911 = vld [vmem:[%s3 + $0x50] sm:$0xff]
    %v912 = vld [vmem:[%s3 + $0x58] sm:$0xff]
    %v913 = vld [vmem:[%s3 + $0x60] sm:$0xff]
    %v914 = vld [vmem:[%s3 + $0x68] sm:$0xff]
    %v915 = vld [vmem:[%s3 + $0x70] sm:$0xff]
    %v916 = vld [vmem:[%s3 + $0x78] sm:$0xff]
    %v917 = vld [vmem:[%s3 + $0x80] sm:$0xff]
    %v918 = vld [vmem:[%s3 + $0x88] sm:$0xff]
    %v919 = vld [vmem:[%s3 + $0x90] sm:$0xff]
    %v920 = vld [vmem:[%s3 + $0x98] sm:$0xff]
    %v921 = vld [vmem:[%s3 + $0xa0] sm:$0xff]
    %v922 = vld [vmem:[%s3 + $0xa8] sm:$0xff]
    %v923 = vld [vmem:[%s3 + $0xb0] sm:$0xff]
    %v924 = vld [vmem:[%s3 + $0xb8] sm:$0xff]
    %v925 = vld [vmem:[%s3 + $0xc0] sm:$0xff]
    %v926 = vld [vmem:[%s3 + $0xc8] sm:$0xff]
    %v927 = vld [vmem:[%s3 + $0xd0] sm:$0xff]
    %v928 = vld [vmem:[%s3 + $0xd8] sm:$0xff]
    %v929 = vld [vmem:[%s3 + $0xe0] sm:$0xff]
    %v930 = vld [vmem:[%s3 + $0xe8] sm:$0xff]
    %v931 = vld [vmem:[%s3 + $0xf0] sm:$0xff]
    %v932 = vld [vmem:[%s3 + $0xf8] sm:$0xff]
    %v933 = vld [vmem:[%s4] sm:$0xff]
    %v934 = vld [vmem:[%s4 + $0x8] sm:$0xff]
    %v935 = vld [vmem:[%s4 + $0x10] sm:$0xff]
    %v936 = vld [vmem:[%s4 + $0x18] sm:$0xff]
    %v937 = vld [vmem:[%s4 + $0x20] sm:$0xff]
    %v938 = vld [vmem:[%s4 + $0x28] sm:$0xff]
    %v939 = vld [vmem:[%s4 + $0x30] sm:$0xff]
    %v940 = vld [vmem:[%s4 + $0x38] sm:$0xff]
    %v941 = vld [vmem:[%s4 + $0x40] sm:$0xff]
    %v942 = vld [vmem:[%s4 + $0x48] sm:$0xff]
    %v943 = vld [vmem:[%s4 + $0x50] sm:$0xff]
    %v944 = vld [vmem:[%s4 + $0x58] sm:$0xff]
    %v945 = vld [vmem:[%s4 + $0x60] sm:$0xff]
    %v946 = vld [vmem:[%s4 + $0x68] sm:$0xff]
    %v947 = vld [vmem:[%s4 + $0x70] sm:$0xff]
    %v948 = vld [vmem:[%s4 + $0x78] sm:$0xff]
    %950 = vset.pattern.permute.xlu0 0
    %951 = vperm.xlu0 %950, %v933
    %v952 = vpop.permute.xlu0 %951
    %955 = vset.pattern.permute.xlu0 0
    %956 = vperm.xlu0 %955, %v934
    %v957 = vpop.permute.xlu0 %956
    %960 = vset.pattern.permute.xlu0 0
    %961 = vperm.xlu0 %960, %v935
    %v962 = vpop.permute.xlu0 %961
    %965 = vset.pattern.permute.xlu0 0
    %966 = vperm.xlu0 %965, %v936
    %v967 = vpop.permute.xlu0 %966
    %970 = vset.pattern.permute.xlu0 0
    %971 = vperm.xlu0 %970, %v937
    %v972 = vpop.permute.xlu0 %971
    %975 = vset.pattern.permute.xlu0 0
    %976 = vperm.xlu0 %975, %v938
    %v977 = vpop.permute.xlu0 %976
    %980 = vset.pattern.permute.xlu0 0
    %981 = vperm.xlu0 %980, %v939
    %v982 = vpop.permute.xlu0 %981
    %985 = vset.pattern.permute.xlu0 0
    %986 = vperm.xlu0 %985, %v940
    %v987 = vpop.permute.xlu0 %986
    %990 = vset.pattern.permute.xlu0 0
    %991 = vperm.xlu0 %990, %v941
    %v992 = vpop.permute.xlu0 %991
    %995 = vset.pattern.permute.xlu0 0
    %996 = vperm.xlu0 %995, %v942
    %v997 = vpop.permute.xlu0 %996
    %1000 = vset.pattern.permute.xlu0 0
    %1001 = vperm.xlu0 %1000, %v943
    %v1002 = vpop.permute.xlu0 %1001
    %1005 = vset.pattern.permute.xlu0 0
    %1006 = vperm.xlu0 %1005, %v944
    %v1007 = vpop.permute.xlu0 %1006
    %1010 = vset.pattern.permute.xlu0 0
    %1011 = vperm.xlu0 %1010, %v945
    %v1012 = vpop.permute.xlu0 %1011
    %1015 = vset.pattern.permute.xlu0 0
    %1016 = vperm.xlu0 %1015, %v946
    %v1017 = vpop.permute.xlu0 %1016
    %1020 = vset.pattern.permute.xlu0 0
    %1021 = vperm.xlu0 %1020, %v947
    %v1022 = vpop.permute.xlu0 %1021
    %1025 = vset.pattern.permute.xlu0 0
    %1026 = vperm.xlu0 %1025, %v948
    %v1027 = vpop.permute.xlu0 %1026
    %1029 = vmatpush.msra.mxu0 %v884
    %1030 = vmatpush.msra.mxu0 %v883
    %1031 = vmatpush.msra.mxu0 %v882
    %1032 = vmatpush.msra.mxu0 %v881
    %1033 = vmatpush.msra.mxu0 %v880
    %1034 = vmatpush.msra.mxu0 %v879
    %1035 = vmatpush.msra.mxu0 %v878
    %1036 = vmatpush.msra.mxu0 %v877
    %1037 = vmatpush.msra.mxu0 %v876
    %1038 = vmatpush.msra.mxu0 %v875
    %1039 = vmatpush.msra.mxu0 %v874
    %1040 = vmatpush.msra.mxu0 %v873
    %1041 = vmatpush.msra.mxu0 %v872
    %1042 = vmatpush.msra.mxu0 %v871
    %1043 = vmatpush.msra.mxu0 %v870
    %1044 = vmatpush.msra.mxu0 %v869
    %1045 = vmatmul.f32.gmra.mxu0 %v901
    %v1046 = vpop.f32.mrf.mxu0
    %v1047 = vadd.f32 %v952, %v1046
    %1048 = vmatmul.f32.gmra.mxu0 %v903
    %v1049 = vpop.f32.mrf.mxu0
    %v1050 = vadd.f32 %v957, %v1049
    %1051 = vmatmul.f32.gmra.mxu0 %v905
    %v1052 = vpop.f32.mrf.mxu0
    %v1053 = vadd.f32 %v962, %v1052
    %1054 = vmatmul.f32.gmra.mxu0 %v907
    %v1055 = vpop.f32.mrf.mxu0
    %v1056 = vadd.f32 %v967, %v1055
    %1057 = vmatmul.f32.gmra.mxu0 %v909
    %v1058 = vpop.f32.mrf.mxu0
    %v1059 = vadd.f32 %v972, %v1058
    %1060 = vmatmul.f32.gmra.mxu0 %v911
    %v1061 = vpop.f32.mrf.mxu0
    %v1062 = vadd.f32 %v977, %v1061
    %1063 = vmatmul.f32.gmra.mxu0 %v913
    %v1064 = vpop.f32.mrf.mxu0
    %v1065 = vadd.f32 %v982, %v1064
    %1066 = vmatmul.f32.gmra.mxu0 %v915
    %v1067 = vpop.f32.mrf.mxu0
    %v1068 = vadd.f32 %v987, %v1067
    %1069 = vmatmul.f32.gmra.mxu0 %v917
    %v1070 = vpop.f32.mrf.mxu0
    %v1071 = vadd.f32 %v992, %v1070
    %1072 = vmatmul.f32.gmra.mxu0 %v919
    %v1073 = vpop.f32.mrf.mxu0
    %v1074 = vadd.f32 %v997, %v1073
    %1075 = vmatmul.f32.gmra.mxu0 %v921
    %v1076 = vpop.f32.mrf.mxu0
    %v1077 = vadd.f32 %v1002, %v1076
    %1078 = vmatmul.f32.gmra.mxu0 %v923
    %v1079 = vpop.f32.mrf.mxu0
    %v1080 = vadd.f32 %v1007, %v1079
    %1081 = vmatmul.f32.gmra.mxu0 %v925
    %v1082 = vpop.f32.mrf.mxu0
    %v1083 = vadd.f32 %v1012, %v1082
    %1084 = vmatmul.f32.gmra.mxu0 %v927
    %v1085 = vpop.f32.mrf.mxu0
    %v1086 = vadd.f32 %v1017, %v1085
    %1087 = vmatmul.f32.gmra.mxu0 %v929
    %v1088 = vpop.f32.mrf.mxu0
    %v1089 = vadd.f32 %v1022, %v1088
    %1090 = vmatmul.f32.gmra.mxu0 %v931
    %v1091 = vpop.f32.mrf.mxu0
    %v1092 = vadd.f32 %v1027, %v1091
    %1093 = vdwg.mxu0
    %1094 = vmatpush.msra.mxu0 %v900
    %1095 = vmatpush.msra.mxu0 %v899
    %1096 = vmatpush.msra.mxu0 %v898
    %1097 = vmatpush.msra.mxu0 %v897
    %1098 = vmatpush.msra.mxu0 %v896
    %1099 = vmatpush.msra.mxu0 %v895
    %1100 = vmatpush.msra.mxu0 %v894
    %1101 = vmatpush.msra.mxu0 %v893
    %1102 = vmatpush.msra.mxu0 %v892
    %1103 = vmatpush.msra.mxu0 %v891
    %1104 = vmatpush.msra.mxu0 %v890
    %1105 = vmatpush.msra.mxu0 %v889
    %1106 = vmatpush.msra.mxu0 %v888
    %1107 = vmatpush.msra.mxu0 %v887
    %1108 = vmatpush.msra.mxu0 %v886
    %1109 = vmatpush.msra.mxu0 %v885
    %1110 = vmatmul.f32.gmra.mxu0 %v902
    %v1111 = vpop.f32.mrf.mxu0
    %v1112 = vadd.f32 %v1047, %v1111
    %1113 = vmatmul.f32.gmra.mxu0 %v904
    %v1114 = vpop.f32.mrf.mxu0
    %v1115 = vadd.f32 %v1050, %v1114
    %1116 = vmatmul.f32.gmra.mxu0 %v906
    %v1117 = vpop.f32.mrf.mxu0
    %v1118 = vadd.f32 %v1053, %v1117
    %1119 = vmatmul.f32.gmra.mxu0 %v908
    %v1120 = vpop.f32.mrf.mxu0
    %v1121 = vadd.f32 %v1056, %v1120
    %1122 = vmatmul.f32.gmra.mxu0 %v910
    %v1123 = vpop.f32.mrf.mxu0
    %v1124 = vadd.f32 %v1059, %v1123
    %1125 = vmatmul.f32.gmra.mxu0 %v912
    %v1126 = vpop.f32.mrf.mxu0
    %v1127 = vadd.f32 %v1062, %v1126
    %1128 = vmatmul.f32.gmra.mxu0 %v914
    %v1129 = vpop.f32.mrf.mxu0
    %v1130 = vadd.f32 %v1065, %v1129
    %1131 = vmatmul.f32.gmra.mxu0 %v916
    %v1132 = vpop.f32.mrf.mxu0
    %v1133 = vadd.f32 %v1068, %v1132
    %1134 = vmatmul.f32.gmra.mxu0 %v918
    %v1135 = vpop.f32.mrf.mxu0
    %v1136 = vadd.f32 %v1071, %v1135
    %1137 = vmatmul.f32.gmra.mxu0 %v920
    %v1138 = vpop.f32.mrf.mxu0
    %v1139 = vadd.f32 %v1074, %v1138
    %1140 = vmatmul.f32.gmra.mxu0 %v922
    %v1141 = vpop.f32.mrf.mxu0
    %v1142 = vadd.f32 %v1077, %v1141
    %1143 = vmatmul.f32.gmra.mxu0 %v924
    %v1144 = vpop.f32.mrf.mxu0
    %v1145 = vadd.f32 %v1080, %v1144
    %1146 = vmatmul.f32.gmra.mxu0 %v926
    %v1147 = vpop.f32.mrf.mxu0
    %v1148 = vadd.f32 %v1083, %v1147
    %1149 = vmatmul.f32.gmra.mxu0 %v928
    %v1150 = vpop.f32.mrf.mxu0
    %v1151 = vadd.f32 %v1086, %v1150
    %1152 = vmatmul.f32.gmra.mxu0 %v930
    %v1153 = vpop.f32.mrf.mxu0
    %v1154 = vadd.f32 %v1089, %v1153
    %1155 = vmatmul.f32.gmra.mxu0 %v932
    %v1156 = vpop.f32.mrf.mxu0
    %v1157 = vadd.f32 %v1092, %v1156
    %1158 = vdwg.mxu0
    %v1159 = vmax.f32 %v1112, 0.0
    %v1160 = vmax.f32 %v1115, 0.0
    %v1161 = vmax.f32 %v1118, 0.0
    %v1162 = vmax.f32 %v1121, 0.0
    %v1163 = vmax.f32 %v1124, 0.0
    %v1164 = vmax.f32 %v1127, 0.0
    %v1165 = vmax.f32 %v1130, 0.0
    %v1166 = vmax.f32 %v1133, 0.0
    %v1167 = vmax.f32 %v1136, 0.0
    %v1168 = vmax.f32 %v1139, 0.0
    %v1169 = vmax.f32 %v1142, 0.0
    %v1170 = vmax.f32 %v1145, 0.0
    %v1171 = vmax.f32 %v1148, 0.0
    %v1172 = vmax.f32 %v1151, 0.0
    %v1173 = vmax.f32 %v1154, 0.0
    %v1174 = vmax.f32 %v1157, 0.0
    %v1175 = vld [vmem:[%s5] sm:$0xff]
    %v1176 = vld [vmem:[%s5 + $0x8] sm:$0xff]
    %v1177 = vld [vmem:[%s5 + $0x10] sm:$0xff]
    %v1178 = vld [vmem:[%s5 + $0x18] sm:$0xff]
    %v1179 = vld [vmem:[%s5 + $0x20] sm:$0xff]
    %v1180 = vld [vmem:[%s5 + $0x28] sm:$0xff]
    %v1181 = vld [vmem:[%s5 + $0x30] sm:$0xff]
    %v1182 = vld [vmem:[%s5 + $0x38] sm:$0xff]
    %v1183 = vld [vmem:[%s5 + $0x40] sm:$0xff]
    %v1184 = vld [vmem:[%s5 + $0x48] sm:$0xff]
    %v1185 = vld [vmem:[%s5 + $0x50] sm:$0xff]
    %v1186 = vld [vmem:[%s5 + $0x58] sm:$0xff]
    %v1187 = vld [vmem:[%s5 + $0x60] sm:$0xff]
    %v1188 = vld [vmem:[%s5 + $0x68] sm:$0xff]
    %v1189 = vld [vmem:[%s5 + $0x70] sm:$0xff]
    %v1190 = vld [vmem:[%s5 + $0x78] sm:$0xff]
    %v1191 = vld [vmem:[%s6] sm:$0xff]
    %v1192 = vld [vmem:[%s6 + $0x8] sm:$0xff]
    %v1193 = vld [vmem:[%s6 + $0x10] sm:$0xff]
    %v1194 = vld [vmem:[%s6 + $0x18] sm:$0xff]
    %v1195 = vld [vmem:[%s6 + $0x20] sm:$0xff]
    %v1196 = vld [vmem:[%s6 + $0x28] sm:$0xff]
    %v1197 = vld [vmem:[%s6 + $0x30] sm:$0xff]
    %v1198 = vld [vmem:[%s6 + $0x38] sm:$0xff]
    %v1199 = vld [vmem:[%s6 + $0x40] sm:$0xff]
    %v1200 = vld [vmem:[%s6 + $0x48] sm:$0xff]
    %v1201 = vld [vmem:[%s6 + $0x50] sm:$0xff]
    %v1202 = vld [vmem:[%s6 + $0x58] sm:$0xff]
    %v1203 = vld [vmem:[%s6 + $0x60] sm:$0xff]
    %v1204 = vld [vmem:[%s6 + $0x68] sm:$0xff]
    %v1205 = vld [vmem:[%s6 + $0x70] sm:$0xff]
    %v1206 = vld [vmem:[%s6 + $0x78] sm:$0xff]
    %1208 = vset.pattern.permute.xlu0 0
    %1209 = vperm.xlu0 %1208, %v1191
    %v1210 = vpop.permute.xlu0 %1209
    %1213 = vset.pattern.permute.xlu0 0
    %1214 = vperm.xlu0 %1213, %v1192
    %v1215 = vpop.permute.xlu0 %1214
    %1218 = vset.pattern.permute.xlu0 0
    %1219 = vperm.xlu0 %1218, %v1193
    %v1220 = vpop.permute.xlu0 %1219
    %1223 = vset.pattern.permute.xlu0 0
    %1224 = vperm.xlu0 %1223, %v1194
    %v1225 = vpop.permute.xlu0 %1224
    %1228 = vset.pattern.permute.xlu0 0
    %1229 = vperm.xlu0 %1228, %v1195
    %v1230 = vpop.permute.xlu0 %1229
    %1233 = vset.pattern.permute.xlu0 0
    %1234 = vperm.xlu0 %1233, %v1196
    %v1235 = vpop.permute.xlu0 %1234
    %1238 = vset.pattern.permute.xlu0 0
    %1239 = vperm.xlu0 %1238, %v1197
    %v1240 = vpop.permute.xlu0 %1239
    %1243 = vset.pattern.permute.xlu0 0
    %1244 = vperm.xlu0 %1243, %v1198
    %v1245 = vpop.permute.xlu0 %1244
    %1248 = vset.pattern.permute.xlu0 0
    %1249 = vperm.xlu0 %1248, %v1199
    %v1250 = vpop.permute.xlu0 %1249
    %1253 = vset.pattern.permute.xlu0 0
    %1254 = vperm.xlu0 %1253, %v1200
    %v1255 = vpop.permute.xlu0 %1254
    %1258 = vset.pattern.permute.xlu0 0
    %1259 = vperm.xlu0 %1258, %v1201
    %v1260 = vpop.permute.xlu0 %1259
    %1263 = vset.pattern.permute.xlu0 0
    %1264 = vperm.xlu0 %1263, %v1202
    %v1265 = vpop.permute.xlu0 %1264
    %1268 = vset.pattern.permute.xlu0 0
    %1269 = vperm.xlu0 %1268, %v1203
    %v1270 = vpop.permute.xlu0 %1269
    %1273 = vset.pattern.permute.xlu0 0
    %1274 = vperm.xlu0 %1273, %v1204
    %v1275 = vpop.permute.xlu0 %1274
    %1278 = vset.pattern.permute.xlu0 0
    %1279 = vperm.xlu0 %1278, %v1205
    %v1280 = vpop.permute.xlu0 %1279
    %1283 = vset.pattern.permute.xlu0 0
    %1284 = vperm.xlu0 %1283, %v1206
    %v1285 = vpop.permute.xlu0 %1284
    %1287 = vmatpush.msra.mxu0 %v1174
    %1288 = vmatpush.msra.mxu0 %v1173
    %1289 = vmatpush.msra.mxu0 %v1172
    %1290 = vmatpush.msra.mxu0 %v1171
    %1291 = vmatpush.msra.mxu0 %v1170
    %1292 = vmatpush.msra.mxu0 %v1169
    %1293 = vmatpush.msra.mxu0 %v1168
    %1294 = vmatpush.msra.mxu0 %v1167
    %1295 = vmatpush.msra.mxu0 %v1166
    %1296 = vmatpush.msra.mxu0 %v1165
    %1297 = vmatpush.msra.mxu0 %v1164
    %1298 = vmatpush.msra.mxu0 %v1163
    %1299 = vmatpush.msra.mxu0 %v1162
    %1300 = vmatpush.msra.mxu0 %v1161
    %1301 = vmatpush.msra.mxu0 %v1160
    %1302 = vmatpush.msra.mxu0 %v1159
    %1303 = vmatmul.f32.gmra.mxu0 %v1175
    %v1304 = vpop.f32.mrf.mxu0
    %v1305 = vadd.f32 %v1210, %v1304
    %1306 = vmatmul.f32.gmra.mxu0 %v1176
    %v1307 = vpop.f32.mrf.mxu0
    %v1308 = vadd.f32 %v1215, %v1307
    %1309 = vmatmul.f32.gmra.mxu0 %v1177
    %v1310 = vpop.f32.mrf.mxu0
    %v1311 = vadd.f32 %v1220, %v1310
    %1312 = vmatmul.f32.gmra.mxu0 %v1178
    %v1313 = vpop.f32.mrf.mxu0
    %v1314 = vadd.f32 %v1225, %v1313
    %1315 = vmatmul.f32.gmra.mxu0 %v1179
    %v1316 = vpop.f32.mrf.mxu0
    %v1317 = vadd.f32 %v1230, %v1316
    %1318 = vmatmul.f32.gmra.mxu0 %v1180
    %v1319 = vpop.f32.mrf.mxu0
    %v1320 = vadd.f32 %v1235, %v1319
    %1321 = vmatmul.f32.gmra.mxu0 %v1181
    %v1322 = vpop.f32.mrf.mxu0
    %v1323 = vadd.f32 %v1240, %v1322
    %1324 = vmatmul.f32.gmra.mxu0 %v1182
    %v1325 = vpop.f32.mrf.mxu0
    %v1326 = vadd.f32 %v1245, %v1325
    %1327 = vmatmul.f32.gmra.mxu0 %v1183
    %v1328 = vpop.f32.mrf.mxu0
    %v1329 = vadd.f32 %v1250, %v1328
    %1330 = vmatmul.f32.gmra.mxu0 %v1184
    %v1331 = vpop.f32.mrf.mxu0
    %v1332 = vadd.f32 %v1255, %v1331
    %1333 = vmatmul.f32.gmra.mxu0 %v1185
    %v1334 = vpop.f32.mrf.mxu0
    %v1335 = vadd.f32 %v1260, %v1334
    %1336 = vmatmul.f32.gmra.mxu0 %v1186
    %v1337 = vpop.f32.mrf.mxu0
    %v1338 = vadd.f32 %v1265, %v1337
    %1339 = vmatmul.f32.gmra.mxu0 %v1187
    %v1340 = vpop.f32.mrf.mxu0
    %v1341 = vadd.f32 %v1270, %v1340
    %1342 = vmatmul.f32.gmra.mxu0 %v1188
    %v1343 = vpop.f32.mrf.mxu0
    %v1344 = vadd.f32 %v1275, %v1343
    %1345 = vmatmul.f32.gmra.mxu0 %v1189
    %v1346 = vpop.f32.mrf.mxu0
    %v1347 = vadd.f32 %v1280, %v1346
    %1348 = vmatmul.f32.gmra.mxu0 %v1190
    %v1349 = vpop.f32.mrf.mxu0
    %v1350 = vadd.f32 %v1285, %v1349
    %1351 = vdwg.mxu0
    %v1352 = vmax.f32 %v1305, 0.0
    %v1353 = vmax.f32 %v1308, 0.0
    %v1354 = vmax.f32 %v1311, 0.0
    %v1355 = vmax.f32 %v1314, 0.0
    %v1356 = vmax.f32 %v1317, 0.0
    %v1357 = vmax.f32 %v1320, 0.0
    %v1358 = vmax.f32 %v1323, 0.0
    %v1359 = vmax.f32 %v1326, 0.0
    %v1360 = vmax.f32 %v1329, 0.0
    %v1361 = vmax.f32 %v1332, 0.0
    %v1362 = vmax.f32 %v1335, 0.0
    %v1363 = vmax.f32 %v1338, 0.0
    %v1364 = vmax.f32 %v1341, 0.0
    %v1365 = vmax.f32 %v1344, 0.0
    %v1366 = vmax.f32 %v1347, 0.0
    %v1367 = vmax.f32 %v1350, 0.0
    %v1368 = vld [vmem:[%s7] sm:$0xff]
    %v1369 = vld [vmem:[%s8] sm:$0xff]
    %1371 = vset.pattern.permute.xlu0 0
    %1372 = vperm.xlu0 %1371, %v1369
    %v1373 = vpop.permute.xlu0 %1372
    %1375 = vmatpush.msra.mxu0 %v1367
    %1376 = vmatpush.msra.mxu0 %v1366
    %1377 = vmatpush.msra.mxu0 %v1365
    %1378 = vmatpush.msra.mxu0 %v1364
    %1379 = vmatpush.msra.mxu0 %v1363
    %1380 = vmatpush.msra.mxu0 %v1362
    %1381 = vmatpush.msra.mxu0 %v1361
    %1382 = vmatpush.msra.mxu0 %v1360
    %1383 = vmatpush.msra.mxu0 %v1359
    %1384 = vmatpush.msra.mxu0 %v1358
    %1385 = vmatpush.msra.mxu0 %v1357
    %1386 = vmatpush.msra.mxu0 %v1356
    %1387 = vmatpush.msra.mxu0 %v1355
    %1388 = vmatpush.msra.mxu0 %v1354
    %1389 = vmatpush.msra.mxu0 %v1353
    %1390 = vmatpush.msra.mxu0 %v1352
    %1391 = vmatmul.f32.gmra.mxu0 %v1368
    %v1392 = vpop.f32.mrf.mxu0
    %v1393 = vadd.f32 %v1373, %v1392
    %1394 = vdwg.mxu0
    %v1395 = vtanh.pop %v1393
    %v1396 = vmul.f32 %v1395, 2.0
    %v1397 = vmin.f32 %v1393, 20.0
    %vm1398 = vcmp.gt.f32.partialorder %v1393, 20.0
    %v1399 = vmul.f32 %v1397, 1.442695
    %v1400 = vpow.pop %v1399
    %v1401 = vadd.f32 %v1400, 1.0
    %v1402 = vlog2.pop %v1401
    %v1403 = vmul.f32 %v1402, 0.6931472
    %v1404 = vmul.f32 -0.5, %v1400
    %v1405 = vadd.f32 %v1404, 1.0
    %v1406 = vmul.f32 %v1405, %v1400
    %v1407 = vand.u32 2147483647, %v1400
    %vm1408 = vcmp.lt.f32.partialorder %v1407, 0.0004427343
    %v1409 = vsel %vm1408, %v1406, %v1403
    %v1410 = vsel %vm1398, %v1393, %v1409
    %v1411 = vmax.f32 %v1410, 0.001
    %vm1412 = vcmask 57344
    %1413 = vst.msk [vmem:[#allocation2] sm:$0x1] %vm1412, %v1396
    %vm1414 = vcmask 58369
    %1415 = vst.msk [vmem:[#allocation2] sm:$0x2] %vm1414, %v1411
    // Predicated region
    $region38: #{tpu_custom_call.1} parent=1 // pred_check
      _
    $region39: #{tpu_custom_call.1} parent=1 // pred_check_branch
      %1417 = sbr.rel (0) target = $region41
    $region40: #{tpu_custom_call.1} parent=1 // pred_region
      %1419 = vsyncadd [#allocation3], 0
      %s1421 = sshll.u32 [#allocation2], 4
      %s1422 = int_to_ptr.vmem [resolvable:$true] %s1421
      %s1423 = sshll.u32 %s9, 4
      %s1424 = int_to_ptr.hbm [resolvable:$true] %s1423
      %1426 = dma.vmem_to_hbm [thread:$0]  %s1422, 32, %s1424, [#allocation3]
    $region41: #{tpu_custom_call.1} parent=1 // pred_fallthru
      _
    // Predicated region
    $region42: #{tpu_custom_call.1} parent=1 // pred_check
      _
    $region43: #{tpu_custom_call.1} parent=1 // pred_check_branch
      %1428 = sbr.rel (0) target = $region45
    $region44: #{tpu_custom_call.1} parent=1 // pred_region
      %1430 = dma.done [#allocation3], 32
    $region45: #{tpu_custom_call.1} parent=1 // pred_fallthru
      _
    %1431 = vsyncpa [#allocation3], 1

</llo_original>
